<compile_context>
chip_gen: v6e
topology: v6e:2x2x1
jax: 0.10.0
libtpu: 0.0.40
codegen_flags: <defaults>
</compile_context>

<pallas_src>
import jax
import jax.numpy as jnp
from jax.experimental import pallas as pl
from jax.experimental.pallas import tpu as pltpu


def _round_up(x, m):
    return ((x + m - 1) // m) * m


def gaussian_kernel(h_ref, w_mu_ref, b_mu_ref, w_sg_ref, b_sg_ref,
                    mu_ref, sigma_ref):
    h = h_ref[...]                                                   # (TB, H)
    mu = jnp.dot(h, w_mu_ref[...],
                 preferred_element_type=jnp.float32) + b_mu_ref[...]
    mu_ref[...] = mu.astype(mu_ref.dtype)

    zs = jnp.dot(h, w_sg_ref[...],
                 preferred_element_type=jnp.float32) + b_sg_ref[...]
    # Overflow-safe softplus: log(1+exp(x)) = max(x,0) + log1p(exp(-|x|)).
    sp = jnp.maximum(zs, 0.0) + jnp.log1p(jnp.exp(-jnp.abs(zs)))
    sigma_ref[...] = (sp + 1e-6).astype(sigma_ref.dtype)


def _pick_block_rows(rows, hidden, out_size, h_itemsize, block_rows):
    # Keep >= 2 grid steps so the "parallel" row axis actually shards across
    # the two v7x TensorCores (grid of 1 would idle the second TC).
    tb = min(block_rows, _round_up(pl.cdiv(rows, 2), 8))
    # VMEM budget (double-buffered h tile + two double-buffered f32 outputs),
    # kept well under the 16 MiB scoped default (v5e) / 32 MiB (v6e, v7x).
    budget = 12 * 1024 * 1024
    per_row = 2 * hidden * h_itemsize + 2 * 2 * out_size * 4
    tb_cap = max(8, (budget // max(per_row, 1)) // 8 * 8)
    return max(8, min(tb, tb_cap))


def gaussian_forward(h, w_mu, b_mu, w_sigma, b_sigma, *,
                     block_rows=2048, min_kernel_rows=256):
    """h: (B, H); w_*: (H, O); b_*: (O,). Returns (mu, sigma), each (B, O)
    (leading dim squeezed if B == 1, matching torch's .squeeze(0))."""
    B, H = h.shape
    O = w_mu.shape[1]

    if B < min_kernel_rows:
        # Tiny-batch fallback: the common DeepAR decode shape (B==1/2).
        # pallas_call launch + pipeline setup would dwarf a few KB of work.
        hf = h.astype(jnp.float32)
        mu = hf @ w_mu.astype(jnp.float32) + b_mu.astype(jnp.float32)
        zs = hf @ w_sigma.astype(jnp.float32) + b_sigma.astype(jnp.float32)
        sigma = jax.nn.softplus(zs) + 1e-6
    else:
        # h stays in its native dtype (bf16 upstream -> bf16 MXU operand,
        # f32 accumulate). Only the tiny params are cast / reshaped.
        wdt = h.dtype
        w_mu_k = w_mu.astype(wdt)
        w_sg_k = w_sigma.astype(wdt)
        b_mu_k = b_mu.reshape(1, O).astype(jnp.float32)
        b_sg_k = b_sigma.reshape(1, O).astype(jnp.float32)

        tb = _pick_block_rows(B, H, O, jnp.dtype(wdt).itemsize, block_rows)
        grid = (pl.cdiv(B, tb),)  # ragged last block handled by Pallas

        mu, sigma = pl.pallas_call(
            gaussian_kernel,
            out_shape=(jax.ShapeDtypeStruct((B, O), jnp.float32),
                       jax.ShapeDtypeStruct((B, O), jnp.float32)),
            grid=grid,
            in_specs=[
                pl.BlockSpec((tb, H), lambda i: (i, 0)),     # h tile per step
                pl.BlockSpec((H, O), lambda i: (0, 0)),      # VMEM-resident
                pl.BlockSpec((1, O), lambda i: (0, 0)),
                pl.BlockSpec((H, O), lambda i: (0, 0)),
                pl.BlockSpec((1, O), lambda i: (0, 0)),
            ],
            out_specs=(pl.BlockSpec((tb, O), lambda i: (i, 0)),
                       pl.BlockSpec((tb, O), lambda i: (i, 0))),
            compiler_params=pltpu.CompilerParams(
                dimension_semantics=("parallel",)),
        )(h, w_mu_k, b_mu_k, w_sg_k, b_sg_k)

    if B == 1:  # torch .squeeze(0) semantics
        mu, sigma = mu[0], sigma[0]
    return mu, sigma


def _reference(h, w_mu, b_mu, w_sigma, b_sigma):
    hf = h.astype(jnp.float32)
    mu = hf @ w_mu + b_mu
    sigma = jax.nn.softplus(hf @ w_sigma + b_sigma) + 1e-6
    return mu, sigma


if __name__ == "__main__":
    key = jax.random.PRNGKey(0)
    H, O = 32, 16  # hidden=32, output(embedding)=16

    k_h1, k_h2, k_wm, k_bm, k_ws, k_bs = jax.random.split(key, 6)
    bound = 1.0 / jnp.sqrt(H)
    w_mu = jax.random.uniform(k_wm, (H, O), minval=-bound, maxval=bound,
                              dtype=jnp.float32)
    b_mu = jax.random.uniform(k_bm, (O,), minval=-bound, maxval=bound,
                              dtype=jnp.float32)
    w_sigma = jax.random.uniform(k_ws, (H, O), minval=-bound, maxval=bound,
                                 dtype=jnp.float32)
    b_sigma = jax.random.uniform(k_bs, (O,), minval=-bound, maxval=bound,
                                 dtype=jnp.float32)

    # 1) Typical DeepAR decode shape (batch=2): goes through the tiny-batch
    #    fallback path.
    h_small = jax.random.normal(k_h1, (2, H), dtype=jnp.float32)
    mu_s, sg_s = gaussian_forward(h_small, w_mu, b_mu, w_sigma, b_sigma)
    jax.block_until_ready((mu_s, sg_s))
    mu_ref_s, sg_ref_s = _reference(h_small, w_mu, b_mu, w_sigma, b_sigma)
    assert mu_s.shape == (2, O) and sg_s.shape == (2, O)
    assert jnp.allclose(mu_s, mu_ref_s, atol=1e-5, rtol=1e-5)
    assert jnp.allclose(sg_s, sg_ref_s, atol=1e-5, rtol=1e-5)

    # 2) Batched path (B=300, not a multiple of the tile): exercises the
    #    Pallas kernel with a ragged last row block and a 2-step grid.
    B = 300
    h_big = jax.random.normal(k_h2, (B, H), dtype=jnp.float32)
    mu_b, sg_b = gaussian_forward(h_big, w_mu, b_mu, w_sigma, b_sigma)
    jax.block_until_ready((mu_b, sg_b))
    mu_ref_b, sg_ref_b = _reference(h_big, w_mu, b_mu, w_sigma, b_sigma)
    assert mu_b.shape == (B, O) and sg_b.shape == (B, O)
    assert jnp.allclose(mu_b, mu_ref_b, atol=1e-4, rtol=1e-4)
    assert jnp.allclose(sg_b, sg_ref_b, atol=1e-4, rtol=1e-4)
    assert bool(jnp.all(sg_b > 0.0))

    print("KERNEL_OK")
</pallas_src>

<mosaic_0001>
module attributes {stable_mosaic.version = 11 : i64} {
  func.func @gaussian_kernel(%arg0: i32, %arg1: memref<152x32xf32, #tpu.memory_space<vmem>>, %arg2: memref<32x16xf32, #tpu.memory_space<vmem>>, %arg3: memref<1x16xf32, #tpu.memory_space<vmem>>, %arg4: memref<32x16xf32, #tpu.memory_space<vmem>>, %arg5: memref<1x16xf32, #tpu.memory_space<vmem>>, %arg6: memref<152x16xf32, #tpu.memory_space<vmem>>, %arg7: memref<152x16xf32, #tpu.memory_space<vmem>>) attributes {dimension_semantics = [#tpu.dimension_semantics<parallel>], iteration_bounds = array<i64: 2>, scalar_prefetch = 0 : i64, scratch_operands = 0 : i64, tpu.core_type = #tpu.core_type<tc>, window_params = [{transform_indices = @transform_0, window_bounds = array<i64: 152, 32>}, {pipeline_mode = #tpu.pipeline_mode<synchronous>, transform_indices = @transform_1, window_bounds = array<i64: 32, 16>}, {pipeline_mode = #tpu.pipeline_mode<synchronous>, transform_indices = @transform_2, window_bounds = array<i64: 1, 16>}, {pipeline_mode = #tpu.pipeline_mode<synchronous>, transform_indices = @transform_3, window_bounds = array<i64: 32, 16>}, {pipeline_mode = #tpu.pipeline_mode<synchronous>, transform_indices = @transform_4, window_bounds = array<i64: 1, 16>}, {transform_indices = @transform_5, window_bounds = array<i64: 152, 16>}, {transform_indices = @transform_6, window_bounds = array<i64: 152, 16>}]} {
    %c0 = arith.constant 0 : index
    %c0_0 = arith.constant 0 : index
    %0 = vector.load %arg1[%c0, %c0_0] : memref<152x32xf32, #tpu.memory_space<vmem>>, vector<152x32xf32>
    %c0_1 = arith.constant 0 : index
    %c0_2 = arith.constant 0 : index
    %1 = vector.load %arg2[%c0_1, %c0_2] : memref<32x16xf32, #tpu.memory_space<vmem>>, vector<32x16xf32>
    %cst = arith.constant dense<0.000000e+00> : vector<152x16xf32>
    %2 = tpu.matmul %0, %1, %cst {dimension_numbers = #tpu.dot_dimension_numbers<[1], [0], [0], [1], [0, 0, 1, 1], [], []>} : vector<152x32xf32>, vector<32x16xf32>, vector<152x16xf32> -> vector<152x16xf32>
    %c0_3 = arith.constant 0 : index
    %c0_4 = arith.constant 0 : index
    %3 = vector.load %arg3[%c0_3, %c0_4] : memref<1x16xf32, #tpu.memory_space<vmem>>, vector<1x16xf32>
    %4 = vector.broadcast %3 : vector<1x16xf32> to vector<152x16xf32>
    %5 = arith.addf %2, %4 : vector<152x16xf32>
    %c0_5 = arith.constant 0 : index
    %c0_6 = arith.constant 0 : index
    %6 = vector.load %arg6[%c0_5, %c0_6] : memref<152x16xf32, #tpu.memory_space<vmem>>, vector<152x16xf32>
    tpu.vector_store %arg6[%c0_5, %c0_6], %5 {strides = array<i32>} : memref<152x16xf32, #tpu.memory_space<vmem>>, vector<152x16xf32>,
    %c0_7 = arith.constant 0 : index
    %c0_8 = arith.constant 0 : index
    %7 = vector.load %arg4[%c0_7, %c0_8] : memref<32x16xf32, #tpu.memory_space<vmem>>, vector<32x16xf32>
    %cst_9 = arith.constant dense<0.000000e+00> : vector<152x16xf32>
    %8 = tpu.matmul %0, %7, %cst_9 {dimension_numbers = #tpu.dot_dimension_numbers<[1], [0], [0], [1], [0, 0, 1, 1], [], []>} : vector<152x32xf32>, vector<32x16xf32>, vector<152x16xf32> -> vector<152x16xf32>
    %c0_10 = arith.constant 0 : index
    %c0_11 = arith.constant 0 : index
    %9 = vector.load %arg5[%c0_10, %c0_11] : memref<1x16xf32, #tpu.memory_space<vmem>>, vector<1x16xf32>
    %10 = vector.broadcast %9 : vector<1x16xf32> to vector<152x16xf32>
    %11 = arith.addf %8, %10 : vector<152x16xf32>
    %cst_12 = arith.constant 0.000000e+00 : f32
    %12 = vector.broadcast %cst_12 : f32 to vector<152x16xf32>
    %13 = arith.maximumf %11, %12 : vector<152x16xf32>
    %14 = math.absf %11 : vector<152x16xf32>
    %cst_13 = arith.constant 0.000000e+00 : f32
    %15 = vector.broadcast %cst_13 : f32 to vector<152x16xf32>
    %16 = arith.subf %15, %14 : vector<152x16xf32>
    %17 = math.exp %16 : vector<152x16xf32>
    %18 = math.log1p %17 : vector<152x16xf32>
    %19 = arith.addf %13, %18 : vector<152x16xf32>
    %cst_14 = arith.constant 9.99999997E-7 : f32
    %20 = vector.broadcast %cst_14 : f32 to vector<152x16xf32>
    %21 = arith.addf %19, %20 : vector<152x16xf32>
    %c0_15 = arith.constant 0 : index
    %c0_16 = arith.constant 0 : index
    %22 = vector.load %arg7[%c0_15, %c0_16] : memref<152x16xf32, #tpu.memory_space<vmem>>, vector<152x16xf32>
    tpu.vector_store %arg7[%c0_15, %c0_16], %21 {strides = array<i32>} : memref<152x16xf32, #tpu.memory_space<vmem>>, vector<152x16xf32>,
    return
  }
  func.func @transform_0(%arg0: i32) -> (i32, i32) {
    %c0_i32 = arith.constant 0 : i32
    %c0_i32_0 = arith.constant 0 : i32
    return %arg0, %c0_i32 : i32, i32
  }
  func.func @transform_1(%arg0: i32) -> (i32, i32) {
    %c0_i32 = arith.constant 0 : i32
    %c0_i32_0 = arith.constant 0 : i32
    %c0_i32_1 = arith.constant 0 : i32
    return %c0_i32, %c0_i32_0 : i32, i32
  }
  func.func @transform_2(%arg0: i32) -> (i32, i32) {
    %c0_i32 = arith.constant 0 : i32
    %c0_i32_0 = arith.constant 0 : i32
    %c0_i32_1 = arith.constant 0 : i32
    return %c0_i32, %c0_i32_0 : i32, i32
  }
  func.func @transform_3(%arg0: i32) -> (i32, i32) {
    %c0_i32 = arith.constant 0 : i32
    %c0_i32_0 = arith.constant 0 : i32
    %c0_i32_1 = arith.constant 0 : i32
    return %c0_i32, %c0_i32_0 : i32, i32
  }
  func.func @transform_4(%arg0: i32) -> (i32, i32) {
    %c0_i32 = arith.constant 0 : i32
    %c0_i32_0 = arith.constant 0 : i32
    %c0_i32_1 = arith.constant 0 : i32
    return %c0_i32, %c0_i32_0 : i32, i32
  }
  func.func @transform_5(%arg0: i32) -> (i32, i32) {
    %c0_i32 = arith.constant 0 : i32
    %c0_i32_0 = arith.constant 0 : i32
    return %arg0, %c0_i32 : i32, i32
  }
  func.func @transform_6(%arg0: i32) -> (i32, i32) {
    %c0_i32 = arith.constant 0 : i32
    %c0_i32_0 = arith.constant 0 : i32
    return %arg0, %c0_i32 : i32, i32
  }
}

</mosaic_0001>

<llo_original>
// kernel: tpu_custom_call.1
$region0: #{tpu_custom_call.1}
  #allocation0 [shape = 'u32[]', space=smem, size = 0x4, offset = 0x4, fixed_abs, tag = 'smem constant byte address 0x4 - core index']
  #allocation1 [shape = 'u32[144,128]{1,0:T(1,128)}', space=vmem, size = 0x12000, scoped, tag = 'internal scratch']
  %s0 = inlined_call_operand.vmem [shape: f32[300,32], index: 0, kind: input, shape index: {}]
  %s1 = inlined_call_operand.vmem [shape: f32[32,16], index: 1, kind: input, shape index: {}]
  %s2 = inlined_call_operand.vmem [shape: f32[1,16], index: 2, kind: input, shape index: {}]
  %s3 = inlined_call_operand.vmem [shape: f32[32,16], index: 3, kind: input, shape index: {}]
  %s4 = inlined_call_operand.vmem [shape: f32[1,16], index: 4, kind: input, shape index: {}]
  %s5 = inlined_call_operand.vmem [shape: f32[300,16], index: 5, kind: output, shape index: {0}]
  %s6 = inlined_call_operand.vmem [shape: f32[300,16], index: 6, kind: output, shape index: {1}]
  %7 = xla_tuple %s5, %s6
  %s8 = sld [smem:[#allocation0]]
  $region61: #{tpu_custom_call.1} parent=0
    _
  %s10 = ssub.s32 1, %s8
  %s11 = scalar_select 0, %s10, %s8
  loop: start=0, step=1, limit=4
  $region2: #{tpu_custom_call.1} parent=0 // loop_pre_header
    _
  $region3: #{tpu_custom_call.1} parent=0 // loop_header
    %s13 = sphi 0, %s17
    %p14 = scmp.ge.s32.totalorder %s13, 4
    %s23 = sphi 0, %s25
    %s26 = sphi 0, %s23
    %s27 = sphi 0, %s26
    %s43 = sphi 0, %s27
    %s47 = sphi 0, %s47
    %s49 = sphi 0, %s47
    %s50 = sphi 0, %s49
    %s64 = sphi 0, %s50
    %s68 = sphi 0, %s68
    %s70 = sphi 0, %s68
    %s71 = sphi 0, %s70
    %s85 = sphi 0, %s71
    %s89 = sphi 0, %s89
    %s91 = sphi 0, %s89
    %s92 = sphi 0, %s91
    %s106 = sphi 0, %s92
    %s110 = sphi 0, %s110
    %s112 = sphi 0, %s110
    %s113 = sphi 0, %s112
    %s127 = sphi 0, %s113
    %s133 = sphi 0, %s135
    %s136 = sphi 0, %s133
    %s137 = sphi 0, %s136
    %s153 = sphi 0, %s137
    %s159 = sphi 0, %s161
    %s162 = sphi 0, %s159
    %s163 = sphi 0, %s162
    %s179 = sphi 0, %s163
  $region4: #{tpu_custom_call.1} parent=0 // loop_header_branch
    %16 = sbr.rel (%p14) target = $region8
  $region5: #{tpu_custom_call.1} parent=0 // loop_body
    %s18 = ssub.s32 %s13, 1
    %s19 = ssub.s32 %s13, 2
    %s20 = sadd.s32 %s13, 1
    %s21 = ssub.s32 %s13, %s20
    %p22 = scmp.eq.s32.totalorder %s21, 0
    %s24 = sadd.s32 %s23, 1
    %s25 = scalar_select %p22, %s23, %s24
    %p28 = pneg %p22
    %p29 = scmp.eq.s32.totalorder %s13, 1
    %p30 = por %p28, %p29
    %p31 = scmp.ne.s32.totalorder %s23, %s26
    %p32 = scmp.eq.s32.totalorder %s13, 0
    %p33 = por %p31, %p32
    %p34 = scmp.ne.s32.totalorder %s23, %s26
    %p35 = scmp.eq.s32.totalorder %s18, 1
    %p36 = por %p34, %p35
    %p37 = scmp.ne.s32.totalorder %s26, %s27
    %p38 = scmp.eq.s32.totalorder %s18, 0
    %p39 = por %p37, %p38
    %p40 = scmp.ne.s32.totalorder %s26, %s27
    %p41 = scmp.eq.s32.totalorder %s19, 1
    %p42 = por %p40, %p41
    %p44 = scmp.ne.s32.totalorder %s27, %s43
    %p45 = scmp.eq.s32.totalorder %s19, 0
    %p46 = por %p44, %p45
    %s48 = sadd.s32 %s47, 1
    %p51 = scmp.eq.s32.totalorder %s13, 1
    %p52 = scmp.ne.s32.totalorder %s47, %s49
    %p53 = scmp.eq.s32.totalorder %s13, 0
    %p54 = por %p52, %p53
    %p55 = scmp.ne.s32.totalorder %s47, %s49
    %p56 = scmp.eq.s32.totalorder %s18, 1
    %p57 = por %p55, %p56
    %p58 = scmp.ne.s32.totalorder %s49, %s50
    %p59 = scmp.eq.s32.totalorder %s18, 0
    %p60 = por %p58, %p59
    %p61 = scmp.ne.s32.totalorder %s49, %s50
    %p62 = scmp.eq.s32.totalorder %s19, 1
    %p63 = por %p61, %p62
    %p65 = scmp.ne.s32.totalorder %s50, %s64
    %p66 = scmp.eq.s32.totalorder %s19, 0
    %p67 = por %p65, %p66
    %s69 = sadd.s32 %s68, 1
    %p72 = scmp.eq.s32.totalorder %s13, 1
    %p73 = scmp.ne.s32.totalorder %s68, %s70
    %p74 = scmp.eq.s32.totalorder %s13, 0
    %p75 = por %p73, %p74
    %p76 = scmp.ne.s32.totalorder %s68, %s70
    %p77 = scmp.eq.s32.totalorder %s18, 1
    %p78 = por %p76, %p77
    %p79 = scmp.ne.s32.totalorder %s70, %s71
    %p80 = scmp.eq.s32.totalorder %s18, 0
    %p81 = por %p79, %p80
    %p82 = scmp.ne.s32.totalorder %s70, %s71
    %p83 = scmp.eq.s32.totalorder %s19, 1
    %p84 = por %p82, %p83
    %p86 = scmp.ne.s32.totalorder %s71, %s85
    %p87 = scmp.eq.s32.totalorder %s19, 0
    %p88 = por %p86, %p87
    %s90 = sadd.s32 %s89, 1
    %p93 = scmp.eq.s32.totalorder %s13, 1
    %p94 = scmp.ne.s32.totalorder %s89, %s91
    %p95 = scmp.eq.s32.totalorder %s13, 0
    %p96 = por %p94, %p95
    %p97 = scmp.ne.s32.totalorder %s89, %s91
    %p98 = scmp.eq.s32.totalorder %s18, 1
    %p99 = por %p97, %p98
    %p100 = scmp.ne.s32.totalorder %s91, %s92
    %p101 = scmp.eq.s32.totalorder %s18, 0
    %p102 = por %p100, %p101
    %p103 = scmp.ne.s32.totalorder %s91, %s92
    %p104 = scmp.eq.s32.totalorder %s19, 1
    %p105 = por %p103, %p104
    %p107 = scmp.ne.s32.totalorder %s92, %s106
    %p108 = scmp.eq.s32.totalorder %s19, 0
    %p109 = por %p107, %p108
    %s111 = sadd.s32 %s110, 1
    %p114 = scmp.eq.s32.totalorder %s13, 1
    %p115 = scmp.ne.s32.totalorder %s110, %s112
    %p116 = scmp.eq.s32.totalorder %s13, 0
    %p117 = por %p115, %p116
    %p118 = scmp.ne.s32.totalorder %s110, %s112
    %p119 = scmp.eq.s32.totalorder %s18, 1
    %p120 = por %p118, %p119
    %p121 = scmp.ne.s32.totalorder %s112, %s113
    %p122 = scmp.eq.s32.totalorder %s18, 0
    %p123 = por %p121, %p122
    %p124 = scmp.ne.s32.totalorder %s112, %s113
    %p125 = scmp.eq.s32.totalorder %s19, 1
    %p126 = por %p124, %p125
    %p128 = scmp.ne.s32.totalorder %s113, %s127
    %p129 = scmp.eq.s32.totalorder %s19, 0
    %p130 = por %p128, %p129
    %s131 = ssub.s32 %s13, %s20
    %p132 = scmp.eq.s32.totalorder %s131, 0
    %s134 = sadd.s32 %s133, 1
    %s135 = scalar_select %p132, %s133, %s134
    %p138 = pneg %p132
    %p139 = scmp.eq.s32.totalorder %s13, 1
    %p140 = por %p138, %p139
    %p141 = scmp.ne.s32.totalorder %s133, %s136
    %p142 = scmp.eq.s32.totalorder %s13, 0
    %p143 = por %p141, %p142
    %p144 = scmp.ne.s32.totalorder %s133, %s136
    %p145 = scmp.eq.s32.totalorder %s18, 1
    %p146 = por %p144, %p145
    %p147 = scmp.ne.s32.totalorder %s136, %s137
    %p148 = scmp.eq.s32.totalorder %s18, 0
    %p149 = por %p147, %p148
    %p150 = scmp.ne.s32.totalorder %s136, %s137
    %p151 = scmp.eq.s32.totalorder %s19, 1
    %p152 = por %p150, %p151
    %p154 = scmp.ne.s32.totalorder %s137, %s153
    %p155 = scmp.eq.s32.totalorder %s19, 0
    %p156 = por %p154, %p155
    %s157 = ssub.s32 %s13, %s20
    %p158 = scmp.eq.s32.totalorder %s157, 0
    %s160 = sadd.s32 %s159, 1
    %s161 = scalar_select %p158, %s159, %s160
    %p164 = pneg %p158
    %p165 = scmp.eq.s32.totalorder %s13, 1
    %p166 = por %p164, %p165
    %p167 = scmp.ne.s32.totalorder %s159, %s162
    %p168 = scmp.eq.s32.totalorder %s13, 0
    %p169 = por %p167, %p168
    %p170 = scmp.ne.s32.totalorder %s159, %s162
    %p171 = scmp.eq.s32.totalorder %s18, 1
    %p172 = por %p170, %p171
    %p173 = scmp.ne.s32.totalorder %s162, %s163
    %p174 = scmp.eq.s32.totalorder %s18, 0
    %p175 = por %p173, %p174
    %p176 = scmp.ne.s32.totalorder %s162, %s163
    %p177 = scmp.eq.s32.totalorder %s19, 1
    %p178 = por %p176, %p177
    %p180 = scmp.ne.s32.totalorder %s163, %s179
    %p181 = scmp.eq.s32.totalorder %s19, 0
    %p182 = por %p180, %p181
    %p183 = scmp.le.s32.totalorder 1, %s13
    %p184 = scmp.lt.s32.totalorder %s13, 3
    %p185 = pnand %p183, %p184
    %p186 = pneg %p185
    // Predicated region
    $region9: #{tpu_custom_call.1} parent=5 // pred_check
      _
    $region10: #{tpu_custom_call.1} parent=5 // pred_check_branch
      %188 = sbr.rel (%p185) target = $region12
    $region11: #{tpu_custom_call.1} parent=5 // pred_region
      %s189 = ssub.s32 %s13, 1
      // Predicated region
      $region13: #{tpu_custom_call.1} parent=11 // pred_check
        %p190 = pneg %p60
      $region14: #{tpu_custom_call.1} parent=11 // pred_check_branch
        %192 = sbr.rel (%p190) target = $region16
      $region15: #{tpu_custom_call.1} parent=11 // pred_region
        _
      $region16: #{tpu_custom_call.1} parent=11 // pred_fallthru
        _
      // Predicated region
      $region17: #{tpu_custom_call.1} parent=11 // pred_check
        %p193 = pneg %p81
      $region18: #{tpu_custom_call.1} parent=11 // pred_check_branch
        %195 = sbr.rel (%p193) target = $region20
      $region19: #{tpu_custom_call.1} parent=11 // pred_region
        _
      $region20: #{tpu_custom_call.1} parent=11 // pred_fallthru
        _
      // Predicated region
      $region21: #{tpu_custom_call.1} parent=11 // pred_check
        %p196 = pneg %p102
      $region22: #{tpu_custom_call.1} parent=11 // pred_check_branch
        %198 = sbr.rel (%p196) target = $region24
      $region23: #{tpu_custom_call.1} parent=11 // pred_region
        _
      $region24: #{tpu_custom_call.1} parent=11 // pred_fallthru
        _
      // Predicated region
      $region25: #{tpu_custom_call.1} parent=11 // pred_check
        %p199 = pneg %p123
      $region26: #{tpu_custom_call.1} parent=11 // pred_check_branch
        %201 = sbr.rel (%p199) target = $region28
      $region27: #{tpu_custom_call.1} parent=11 // pred_region
        _
      $region28: #{tpu_custom_call.1} parent=11 // pred_fallthru
        _
    $region12: #{tpu_custom_call.1} parent=5 // pred_fallthru
      _
    %p202 = scmp.lt.s32.totalorder %s13, 2
    // Predicated region
    $region29: #{tpu_custom_call.1} parent=5 // pred_check
      %p203 = pneg %p202
    $region30: #{tpu_custom_call.1} parent=5 // pred_check_branch
      %205 = sbr.rel (%p203) target = $region32
    $region31: #{tpu_custom_call.1} parent=5 // pred_region
      // Predicated region
      $region33: #{tpu_custom_call.1} parent=31 // pred_check
        %p206 = pneg %p33
      $region34: #{tpu_custom_call.1} parent=31 // pred_check_branch
        %208 = sbr.rel (%p206) target = $region36
      $region35: #{tpu_custom_call.1} parent=31 // pred_region
        %s209 = smul.u32 19, %s13
        %p210 = scmp.lt.s32.totalorder %s209, 37
        %s211 = scalar_select %p210, %s209, 37
        %s212 = smul.addr %s211, 8
        %s213 = scalar_lea.vmem %s0, %s212
        %s214 = smul.u32 19, %s13
      $region36: #{tpu_custom_call.1} parent=31 // pred_fallthru
        _
    $region32: #{tpu_custom_call.1} parent=5 // pred_fallthru
      _
    %p215 = scmp.le.s32.totalorder 1, %s13
    %p216 = scmp.lt.s32.totalorder %s13, 3
    %p217 = pnand %p215, %p216
    %p218 = pneg %p217
    // Predicated region
    $region37: #{tpu_custom_call.1} parent=5 // pred_check
      _
    $region38: #{tpu_custom_call.1} parent=5 // pred_check_branch
      %220 = sbr.rel (%p217) target = $region40
    $region39: #{tpu_custom_call.1} parent=5 // pred_region
      %s221 = ssub.s32 %s13, 1
      %s222 = smul.u32 19, %s18
      %p223 = scmp.lt.s32.totalorder %s222, 37
      %s224 = scalar_select %p223, %s222, 37
      %s225 = smul.addr %s224, 8
      %s226 = scalar_lea.vmem %s0, %s225
      %p227 = pneg %p39
      %p228 = pneg %p36
      %p229 = pneg %p60
      %p230 = pneg %p57
      %p231 = pneg %p81
      %p232 = pneg %p78
      %p233 = pneg %p102
      %p234 = pneg %p99
      %p235 = pneg %p123
      %p236 = pneg %p120
      %p237 = pneg %p149
      %p238 = pneg %p146
      %s239 = smul.u32 19, %s18
      %p240 = scmp.lt.s32.totalorder %s239, 37
      %s241 = scalar_select %p240, %s239, 37
      %s242 = smul.addr %s241, 8
      %s243 = scalar_lea.vmem %s5, %s242
      %p244 = pneg %p175
      %p245 = pneg %p172
      %s246 = smul.u32 19, %s18
      %p247 = scmp.lt.s32.totalorder %s246, 37
      %s248 = scalar_select %p247, %s246, 37
      %s249 = smul.addr %s248, 8
      %s250 = scalar_lea.vmem %s6, %s249
      %s251 = smul.u32 19, %s18
      %p252 = scmp.lt.s32.totalorder %s251, 37
      %s253 = scalar_select %p252, %s251, 37
      %s254 = smul.addr %s253, 8
      %s255 = scalar_lea.vmem %s0, %s254
      %s256 = smul.u32 19, %s18
      %s257 = smul.u32 19, %s18
      %p258 = scmp.lt.s32.totalorder %s257, 37
      %s259 = scalar_select %p258, %s257, 37
      %s260 = smul.addr %s259, 8
      %s261 = scalar_lea.vmem %s5, %s260
      %s262 = smul.u32 19, %s18
      %s263 = smul.u32 19, %s18
      %p264 = scmp.lt.s32.totalorder %s263, 37
      %s265 = scalar_select %p264, %s263, 37
      %s266 = smul.addr %s265, 8
      %s267 = scalar_lea.vmem %s6, %s266
      %s268 = smul.u32 19, %s18
      %v269 = vld [vmem:[%s255] sm:$0xff]
      %v270 = vld [vmem:[%s255 + $0x8] sm:$0xff]
      %v271 = vld [vmem:[%s255 + $0x10] sm:$0xff]
      %v272 = vld [vmem:[%s255 + $0x18] sm:$0xff]
      %v273 = vld [vmem:[%s255 + $0x20] sm:$0xff]
      %v274 = vld [vmem:[%s255 + $0x28] sm:$0xff]
      %v275 = vld [vmem:[%s255 + $0x30] sm:$0xff]
      %v276 = vld [vmem:[%s255 + $0x38] sm:$0xff]
      %v277 = vld [vmem:[%s255 + $0x40] sm:$0xff]
      %v278 = vld [vmem:[%s255 + $0x48] sm:$0xff]
      %v279 = vld [vmem:[%s255 + $0x50] sm:$0xff]
      %v280 = vld [vmem:[%s255 + $0x58] sm:$0xff]
      %v281 = vld [vmem:[%s255 + $0x60] sm:$0xff]
      %v282 = vld [vmem:[%s255 + $0x68] sm:$0xff]
      %v283 = vld [vmem:[%s255 + $0x70] sm:$0xff]
      %v284 = vld [vmem:[%s255 + $0x78] sm:$0xff]
      %v285 = vld [vmem:[%s255 + $0x80] sm:$0xff]
      %v286 = vld [vmem:[%s255 + $0x88] sm:$0xff]
      %v287 = vld [vmem:[%s255 + $0x90] sm:$0xff]
      %v288 = vld [vmem:[%s1] sm:$0xff]
      %v289 = vld [vmem:[%s1 + $0x8] sm:$0xff]
      %v290 = vld [vmem:[%s1 + $0x10] sm:$0xff]
      %v291 = vld [vmem:[%s1 + $0x18] sm:$0xff]
      %v292 = vld [vmem:[%s2] sm:$0x1]
      %v294 = vlaneseq
      %v295 = vshrl.u32 %v294, 7
      %v296 = vsub.s32 0, %v295
      %v297 = vrot.slane %v292, %v296
      %vm299 = vcmask 261120
      %v301 = vsel %vm299, %v269, 0
      %v304 = vsel %vm299, %v270, 0
      %v307 = vsel %vm299, %v271, 0
      %v310 = vsel %vm299, %v272, 0
      %v313 = vsel %vm299, %v273, 0
      %v316 = vsel %vm299, %v274, 0
      %v319 = vsel %vm299, %v275, 0
      %v322 = vsel %vm299, %v276, 0
      %v325 = vsel %vm299, %v277, 0
      %v328 = vsel %vm299, %v278, 0
      %v331 = vsel %vm299, %v279, 0
      %v334 = vsel %vm299, %v280, 0
      %v337 = vsel %vm299, %v281, 0
      %v340 = vsel %vm299, %v282, 0
      %v343 = vsel %vm299, %v283, 0
      %v346 = vsel %vm299, %v284, 0
      %v349 = vsel %vm299, %v285, 0
      %v352 = vsel %vm299, %v286, 0
      %v355 = vsel %vm299, %v287, 0
      %357 = vmatprep.subr.mxu0 0.0
      %358 = vmatpush1.msra.mxu0 0.0
      %359 = vmatprep.subr.mxu0 0.0
      %360 = vmatpush1.msra.mxu0 0.0
      %361 = vmatprep.subr.mxu0 0.0
      %362 = vmatpush1.msra.mxu0 0.0
      %363 = vmatprep.subr.mxu0 0.0
      %364 = vmatpush1.msra.mxu0 0.0
      %365 = vmatprep.subr.mxu0 0.0
      %366 = vmatpush1.msra.mxu0 0.0
      %367 = vmatprep.subr.mxu0 0.0
      %368 = vmatpush1.msra.mxu0 0.0
      %369 = vmatprep.subr.mxu0 0.0
      %370 = vmatpush1.msra.mxu0 0.0
      %371 = vmatprep.subr.mxu0 0.0
      %372 = vmatpush1.msra.mxu0 0.0
      %373 = vmatprep.subr.mxu0 0.0
      %374 = vmatpush1.msra.mxu0 0.0
      %375 = vmatprep.subr.mxu0 0.0
      %376 = vmatpush1.msra.mxu0 0.0
      %377 = vmatprep.subr.mxu0 0.0
      %378 = vmatpush1.msra.mxu0 0.0
      %379 = vmatprep.subr.mxu0 0.0
      %380 = vmatpush1.msra.mxu0 0.0
      %381 = vmatprep.subr.mxu0 0.0
      %382 = vmatpush1.msra.mxu0 %v291
      %383 = vmatprep.subr.mxu0 0.0
      %384 = vmatpush1.msra.mxu0 %v290
      %385 = vmatprep.subr.mxu0 0.0
      %386 = vmatpush1.msra.mxu0 %v289
      %387 = vmatprep.subr.mxu0 0.0
      %388 = vmatpush1.msra.mxu0 %v288
      %389 = vmatprep.subr.mxu0 0.0
      %390 = vmatpush2.msra.mxu0 0.0
      %391 = vmatprep.subr.mxu0 0.0
      %392 = vmatpush2.msra.mxu0 0.0
      %393 = vmatprep.subr.mxu0 0.0
      %394 = vmatpush2.msra.mxu0 0.0
      %395 = vmatprep.subr.mxu0 0.0
      %396 = vmatpush2.msra.mxu0 0.0
      %397 = vmatprep.subr.mxu0 0.0
      %398 = vmatpush2.msra.mxu0 0.0
      %399 = vmatprep.subr.mxu0 0.0
      %400 = vmatpush2.msra.mxu0 0.0
      %401 = vmatprep.subr.mxu0 0.0
      %402 = vmatpush2.msra.mxu0 0.0
      %403 = vmatprep.subr.mxu0 0.0
      %404 = vmatpush2.msra.mxu0 0.0
      %405 = vmatprep.subr.mxu0 0.0
      %406 = vmatpush2.msra.mxu0 0.0
      %407 = vmatprep.subr.mxu0 0.0
      %408 = vmatpush2.msra.mxu0 0.0
      %409 = vmatprep.subr.mxu0 0.0
      %410 = vmatpush2.msra.mxu0 0.0
      %411 = vmatprep.subr.mxu0 0.0
      %412 = vmatpush2.msra.mxu0 0.0
      %413 = vmatprep.subr.mxu0 0.0
      %414 = vmatpush2.msra.mxu0 0.0
      %415 = vmatprep.subr.mxu0 0.0
      %416 = vmatpush2.msra.mxu0 0.0
      %417 = vmatprep.subr.mxu0 0.0
      %418 = vmatpush2.msra.mxu0 0.0
      %419 = vmatprep.subr.mxu0 0.0
      %420 = vmatpush2.msra.mxu0 0.0
      %421 = vmatprep.mubr.f32.mxu0 0.0
      %422 = vmatmul.mubr.f32.gmra.mxu0 %v301
      %v423 = vpop.f32.mrf.mxu0
      %v424 = vadd.f32 %v297, %v423
      %v425 = vpop.f32.mrf.mxu0
      %426 = vmatprep.mubr.f32.mxu0 0.0
      %427 = vmatmul.mubr.f32.gmra.mxu0 %v304
      %v428 = vpop.f32.mrf.mxu0
      %v429 = vadd.f32 %v297, %v428
      %v430 = vpop.f32.mrf.mxu0
      %431 = vmatprep.mubr.f32.mxu0 0.0
      %432 = vmatmul.mubr.f32.gmra.mxu0 %v307
      %v433 = vpop.f32.mrf.mxu0
      %v434 = vadd.f32 %v297, %v433
      %v435 = vpop.f32.mrf.mxu0
      %436 = vmatprep.mubr.f32.mxu0 0.0
      %437 = vmatmul.mubr.f32.gmra.mxu0 %v310
      %v438 = vpop.f32.mrf.mxu0
      %v439 = vadd.f32 %v297, %v438
      %v440 = vpop.f32.mrf.mxu0
      %441 = vmatprep.mubr.f32.mxu0 0.0
      %442 = vmatmul.mubr.f32.gmra.mxu0 %v313
      %v443 = vpop.f32.mrf.mxu0
      %v444 = vadd.f32 %v297, %v443
      %v445 = vpop.f32.mrf.mxu0
      %446 = vmatprep.mubr.f32.mxu0 0.0
      %447 = vmatmul.mubr.f32.gmra.mxu0 %v316
      %v448 = vpop.f32.mrf.mxu0
      %v449 = vadd.f32 %v297, %v448
      %v450 = vpop.f32.mrf.mxu0
      %451 = vmatprep.mubr.f32.mxu0 0.0
      %452 = vmatmul.mubr.f32.gmra.mxu0 %v319
      %v453 = vpop.f32.mrf.mxu0
      %v454 = vadd.f32 %v297, %v453
      %v455 = vpop.f32.mrf.mxu0
      %456 = vmatprep.mubr.f32.mxu0 0.0
      %457 = vmatmul.mubr.f32.gmra.mxu0 %v322
      %v458 = vpop.f32.mrf.mxu0
      %v459 = vadd.f32 %v297, %v458
      %v460 = vpop.f32.mrf.mxu0
      %461 = vmatprep.mubr.f32.mxu0 0.0
      %462 = vmatmul.mubr.f32.gmra.mxu0 %v325
      %v463 = vpop.f32.mrf.mxu0
      %v464 = vadd.f32 %v297, %v463
      %v465 = vpop.f32.mrf.mxu0
      %466 = vmatprep.mubr.f32.mxu0 0.0
      %467 = vmatmul.mubr.f32.gmra.mxu0 %v328
      %v468 = vpop.f32.mrf.mxu0
      %v469 = vadd.f32 %v297, %v468
      %v470 = vpop.f32.mrf.mxu0
      %471 = vmatprep.mubr.f32.mxu0 0.0
      %472 = vmatmul.mubr.f32.gmra.mxu0 %v331
      %v473 = vpop.f32.mrf.mxu0
      %v474 = vadd.f32 %v297, %v473
      %v475 = vpop.f32.mrf.mxu0
      %476 = vmatprep.mubr.f32.mxu0 0.0
      %477 = vmatmul.mubr.f32.gmra.mxu0 %v334
      %v478 = vpop.f32.mrf.mxu0
      %v479 = vadd.f32 %v297, %v478
      %v480 = vpop.f32.mrf.mxu0
      %481 = vmatprep.mubr.f32.mxu0 0.0
      %482 = vmatmul.mubr.f32.gmra.mxu0 %v337
      %v483 = vpop.f32.mrf.mxu0
      %v484 = vadd.f32 %v297, %v483
      %v485 = vpop.f32.mrf.mxu0
      %486 = vmatprep.mubr.f32.mxu0 0.0
      %487 = vmatmul.mubr.f32.gmra.mxu0 %v340
      %v488 = vpop.f32.mrf.mxu0
      %v489 = vadd.f32 %v297, %v488
      %v490 = vpop.f32.mrf.mxu0
      %491 = vmatprep.mubr.f32.mxu0 0.0
      %492 = vmatmul.mubr.f32.gmra.mxu0 %v343
      %v493 = vpop.f32.mrf.mxu0
      %v494 = vadd.f32 %v297, %v493
      %v495 = vpop.f32.mrf.mxu0
      %496 = vmatprep.mubr.f32.mxu0 0.0
      %497 = vmatmul.mubr.f32.gmra.mxu0 %v346
      %v498 = vpop.f32.mrf.mxu0
      %v499 = vadd.f32 %v297, %v498
      %v500 = vpop.f32.mrf.mxu0
      %501 = vmatprep.mubr.f32.mxu0 0.0
      %502 = vmatmul.mubr.f32.gmra.mxu0 %v349
      %v503 = vpop.f32.mrf.mxu0
      %v504 = vadd.f32 %v297, %v503
      %v505 = vpop.f32.mrf.mxu0
      %506 = vmatprep.mubr.f32.mxu0 0.0
      %507 = vmatmul.mubr.f32.gmra.mxu0 %v352
      %v508 = vpop.f32.mrf.mxu0
      %v509 = vadd.f32 %v297, %v508
      %v510 = vpop.f32.mrf.mxu0
      %511 = vmatprep.mubr.f32.mxu0 0.0
      %512 = vmatmul.mubr.f32.gmra.mxu0 %v355
      %v513 = vpop.f32.mrf.mxu0
      %v514 = vadd.f32 %v297, %v513
      %v515 = vpop.f32.mrf.mxu0
      %516 = vdwg.mxu0
      %vm517 = vcmask 130048
      %518 = vst.msk [vmem:[%s261] sm:$0xff] %vm517, %v424
      %519 = vst.msk [vmem:[%s261 + $0x8] sm:$0xff] %vm517, %v429
      %520 = vst.msk [vmem:[%s261 + $0x10] sm:$0xff] %vm517, %v434
      %521 = vst.msk [vmem:[%s261 + $0x18] sm:$0xff] %vm517, %v439
      %522 = vst.msk [vmem:[%s261 + $0x20] sm:$0xff] %vm517, %v444
      %523 = vst.msk [vmem:[%s261 + $0x28] sm:$0xff] %vm517, %v449
      %524 = vst.msk [vmem:[%s261 + $0x30] sm:$0xff] %vm517, %v454
      %525 = vst.msk [vmem:[%s261 + $0x38] sm:$0xff] %vm517, %v459
      %526 = vst.msk [vmem:[%s261 + $0x40] sm:$0xff] %vm517, %v464
      %527 = vst.msk [vmem:[%s261 + $0x48] sm:$0xff] %vm517, %v469
      %528 = vst.msk [vmem:[%s261 + $0x50] sm:$0xff] %vm517, %v474
      %529 = vst.msk [vmem:[%s261 + $0x58] sm:$0xff] %vm517, %v479
      %530 = vst.msk [vmem:[%s261 + $0x60] sm:$0xff] %vm517, %v484
      %531 = vst.msk [vmem:[%s261 + $0x68] sm:$0xff] %vm517, %v489
      %532 = vst.msk [vmem:[%s261 + $0x70] sm:$0xff] %vm517, %v494
      %533 = vst.msk [vmem:[%s261 + $0x78] sm:$0xff] %vm517, %v499
      %534 = vst.msk [vmem:[%s261 + $0x80] sm:$0xff] %vm517, %v504
      %535 = vst.msk [vmem:[%s261 + $0x88] sm:$0xff] %vm517, %v509
      %536 = vst.msk [vmem:[%s261 + $0x90] sm:$0xff] %vm517, %v514
      %v537 = vld [vmem:[%s3] sm:$0xff]
      %v538 = vld [vmem:[%s3 + $0x8] sm:$0xff]
      %v539 = vld [vmem:[%s3 + $0x10] sm:$0xff]
      %v540 = vld [vmem:[%s3 + $0x18] sm:$0xff]
      %v541 = vld [vmem:[%s4] sm:$0x1]
      %v543 = vlaneseq
      %v544 = vshrl.u32 %v543, 7
      %v545 = vsub.s32 0, %v544
      %v546 = vrot.slane %v541, %v545
      %548 = vmatprep.subr.mxu0 0.0
      %549 = vmatpush1.msra.mxu0 0.0
      %550 = vmatprep.subr.mxu0 0.0
      %551 = vmatpush1.msra.mxu0 0.0
      %552 = vmatprep.subr.mxu0 0.0
      %553 = vmatpush1.msra.mxu0 0.0
      %554 = vmatprep.subr.mxu0 0.0
      %555 = vmatpush1.msra.mxu0 0.0
      %556 = vmatprep.subr.mxu0 0.0
      %557 = vmatpush1.msra.mxu0 0.0
      %558 = vmatprep.subr.mxu0 0.0
      %559 = vmatpush1.msra.mxu0 0.0
      %560 = vmatprep.subr.mxu0 0.0
      %561 = vmatpush1.msra.mxu0 0.0
      %562 = vmatprep.subr.mxu0 0.0
      %563 = vmatpush1.msra.mxu0 0.0
      %564 = vmatprep.subr.mxu0 0.0
      %565 = vmatpush1.msra.mxu0 0.0
      %566 = vmatprep.subr.mxu0 0.0
      %567 = vmatpush1.msra.mxu0 0.0
      %568 = vmatprep.subr.mxu0 0.0
      %569 = vmatpush1.msra.mxu0 0.0
      %570 = vmatprep.subr.mxu0 0.0
      %571 = vmatpush1.msra.mxu0 0.0
      %572 = vmatprep.subr.mxu0 0.0
      %573 = vmatpush1.msra.mxu0 %v540
      %574 = vmatprep.subr.mxu0 0.0
      %575 = vmatpush1.msra.mxu0 %v539
      %576 = vmatprep.subr.mxu0 0.0
      %577 = vmatpush1.msra.mxu0 %v538
      %578 = vmatprep.subr.mxu0 0.0
      %579 = vmatpush1.msra.mxu0 %v537
      %580 = vmatprep.subr.mxu0 0.0
      %581 = vmatpush2.msra.mxu0 0.0
      %582 = vmatprep.subr.mxu0 0.0
      %583 = vmatpush2.msra.mxu0 0.0
      %584 = vmatprep.subr.mxu0 0.0
      %585 = vmatpush2.msra.mxu0 0.0
      %586 = vmatprep.subr.mxu0 0.0
      %587 = vmatpush2.msra.mxu0 0.0
      %588 = vmatprep.subr.mxu0 0.0
      %589 = vmatpush2.msra.mxu0 0.0
      %590 = vmatprep.subr.mxu0 0.0
      %591 = vmatpush2.msra.mxu0 0.0
      %592 = vmatprep.subr.mxu0 0.0
      %593 = vmatpush2.msra.mxu0 0.0
      %594 = vmatprep.subr.mxu0 0.0
      %595 = vmatpush2.msra.mxu0 0.0
      %596 = vmatprep.subr.mxu0 0.0
      %597 = vmatpush2.msra.mxu0 0.0
      %598 = vmatprep.subr.mxu0 0.0
      %599 = vmatpush2.msra.mxu0 0.0
      %600 = vmatprep.subr.mxu0 0.0
      %601 = vmatpush2.msra.mxu0 0.0
      %602 = vmatprep.subr.mxu0 0.0
      %603 = vmatpush2.msra.mxu0 0.0
      %604 = vmatprep.subr.mxu0 0.0
      %605 = vmatpush2.msra.mxu0 0.0
      %606 = vmatprep.subr.mxu0 0.0
      %607 = vmatpush2.msra.mxu0 0.0
      %608 = vmatprep.subr.mxu0 0.0
      %609 = vmatpush2.msra.mxu0 0.0
      %610 = vmatprep.subr.mxu0 0.0
      %611 = vmatpush2.msra.mxu0 0.0
      %612 = vmatprep.mubr.f32.mxu0 0.0
      %613 = vmatmul.mubr.f32.gmra.mxu0 %v301
      %v614 = vpop.f32.mrf.mxu0
      %v615 = vadd.f32 %v546, %v614
      %v616 = vpop.f32.mrf.mxu0
      %617 = vmatprep.mubr.f32.mxu0 0.0
      %618 = vmatmul.mubr.f32.gmra.mxu0 %v304
      %v619 = vpop.f32.mrf.mxu0
      %v620 = vadd.f32 %v546, %v619
      %v621 = vpop.f32.mrf.mxu0
      %622 = vmatprep.mubr.f32.mxu0 0.0
      %623 = vmatmul.mubr.f32.gmra.mxu0 %v307
      %v624 = vpop.f32.mrf.mxu0
      %v625 = vadd.f32 %v546, %v624
      %v626 = vpop.f32.mrf.mxu0
      %627 = vmatprep.mubr.f32.mxu0 0.0
      %628 = vmatmul.mubr.f32.gmra.mxu0 %v310
      %v629 = vpop.f32.mrf.mxu0
      %v630 = vadd.f32 %v546, %v629
      %v631 = vpop.f32.mrf.mxu0
      %632 = vmatprep.mubr.f32.mxu0 0.0
      %633 = vmatmul.mubr.f32.gmra.mxu0 %v313
      %v634 = vpop.f32.mrf.mxu0
      %v635 = vadd.f32 %v546, %v634
      %v636 = vpop.f32.mrf.mxu0
      %637 = vmatprep.mubr.f32.mxu0 0.0
      %638 = vmatmul.mubr.f32.gmra.mxu0 %v316
      %v639 = vpop.f32.mrf.mxu0
      %v640 = vadd.f32 %v546, %v639
      %v641 = vpop.f32.mrf.mxu0
      %642 = vmatprep.mubr.f32.mxu0 0.0
      %643 = vmatmul.mubr.f32.gmra.mxu0 %v319
      %v644 = vpop.f32.mrf.mxu0
      %v645 = vadd.f32 %v546, %v644
      %v646 = vpop.f32.mrf.mxu0
      %647 = vmatprep.mubr.f32.mxu0 0.0
      %648 = vmatmul.mubr.f32.gmra.mxu0 %v322
      %v649 = vpop.f32.mrf.mxu0
      %v650 = vadd.f32 %v546, %v649
      %v651 = vpop.f32.mrf.mxu0
      %652 = vmatprep.mubr.f32.mxu0 0.0
      %653 = vmatmul.mubr.f32.gmra.mxu0 %v325
      %v654 = vpop.f32.mrf.mxu0
      %v655 = vadd.f32 %v546, %v654
      %v656 = vpop.f32.mrf.mxu0
      %657 = vmatprep.mubr.f32.mxu0 0.0
      %658 = vmatmul.mubr.f32.gmra.mxu0 %v328
      %v659 = vpop.f32.mrf.mxu0
      %v660 = vadd.f32 %v546, %v659
      %v661 = vpop.f32.mrf.mxu0
      %662 = vmatprep.mubr.f32.mxu0 0.0
      %663 = vmatmul.mubr.f32.gmra.mxu0 %v331
      %v664 = vpop.f32.mrf.mxu0
      %v665 = vadd.f32 %v546, %v664
      %v666 = vpop.f32.mrf.mxu0
      %667 = vmatprep.mubr.f32.mxu0 0.0
      %668 = vmatmul.mubr.f32.gmra.mxu0 %v334
      %v669 = vpop.f32.mrf.mxu0
      %v670 = vadd.f32 %v546, %v669
      %v671 = vpop.f32.mrf.mxu0
      %672 = vmatprep.mubr.f32.mxu0 0.0
      %673 = vmatmul.mubr.f32.gmra.mxu0 %v337
      %v674 = vpop.f32.mrf.mxu0
      %v675 = vadd.f32 %v546, %v674
      %v676 = vpop.f32.mrf.mxu0
      %677 = vmatprep.mubr.f32.mxu0 0.0
      %678 = vmatmul.mubr.f32.gmra.mxu0 %v340
      %v679 = vpop.f32.mrf.mxu0
      %v680 = vadd.f32 %v546, %v679
      %v681 = vpop.f32.mrf.mxu0
      %682 = vmatprep.mubr.f32.mxu0 0.0
      %683 = vmatmul.mubr.f32.gmra.mxu0 %v343
      %v684 = vpop.f32.mrf.mxu0
      %v685 = vadd.f32 %v546, %v684
      %v686 = vpop.f32.mrf.mxu0
      %687 = vmatprep.mubr.f32.mxu0 0.0
      %688 = vmatmul.mubr.f32.gmra.mxu0 %v346
      %v689 = vpop.f32.mrf.mxu0
      %v690 = vadd.f32 %v546, %v689
      %v691 = vpop.f32.mrf.mxu0
      %692 = vmatprep.mubr.f32.mxu0 0.0
      %693 = vmatmul.mubr.f32.gmra.mxu0 %v349
      %v694 = vpop.f32.mrf.mxu0
      %v695 = vadd.f32 %v546, %v694
      %v696 = vpop.f32.mrf.mxu0
      %697 = vmatprep.mubr.f32.mxu0 0.0
      %698 = vmatmul.mubr.f32.gmra.mxu0 %v352
      %v699 = vpop.f32.mrf.mxu0
      %v700 = vadd.f32 %v546, %v699
      %v701 = vpop.f32.mrf.mxu0
      %702 = vmatprep.mubr.f32.mxu0 0.0
      %703 = vmatmul.mubr.f32.gmra.mxu0 %v355
      %v704 = vpop.f32.mrf.mxu0
      %v705 = vadd.f32 %v546, %v704
      %v706 = vpop.f32.mrf.mxu0
      %707 = vdwg.mxu0
      %v708 = vmax.f32 %v615, 0.0
      %v709 = vmax.f32 %v620, 0.0
      %v710 = vmax.f32 %v625, 0.0
      %v711 = vmax.f32 %v630, 0.0
      %v712 = vmax.f32 %v635, 0.0
      %v713 = vmax.f32 %v640, 0.0
      %v714 = vmax.f32 %v645, 0.0
      %v715 = vmax.f32 %v650, 0.0
      %v716 = vmax.f32 %v655, 0.0
      %v717 = vmax.f32 %v660, 0.0
      %v718 = vmax.f32 %v665, 0.0
      %v719 = vmax.f32 %v670, 0.0
      %v720 = vmax.f32 %v675, 0.0
      %v721 = vmax.f32 %v680, 0.0
      %v722 = vmax.f32 %v685, 0.0
      %v723 = vmax.f32 %v690, 0.0
      %v724 = vmax.f32 %v695, 0.0
      %v725 = vmax.f32 %v700, 0.0
      %v726 = vmax.f32 %v705, 0.0
      %v727 = vand.u32 2147483647, %v615
      %v728 = vand.u32 2147483647, %v620
      %v729 = vand.u32 2147483647, %v625
      %v730 = vand.u32 2147483647, %v630
      %v731 = vand.u32 2147483647, %v635
      %v732 = vand.u32 2147483647, %v640
      %v733 = vand.u32 2147483647, %v645
      %v734 = vand.u32 2147483647, %v650
      %v735 = vand.u32 2147483647, %v655
      %v736 = vand.u32 2147483647, %v660
      %v737 = vand.u32 2147483647, %v665
      %v738 = vand.u32 2147483647, %v670
      %v739 = vand.u32 2147483647, %v675
      %v740 = vand.u32 2147483647, %v680
      %v741 = vand.u32 2147483647, %v685
      %v742 = vand.u32 2147483647, %v690
      %v743 = vand.u32 2147483647, %v695
      %v744 = vand.u32 2147483647, %v700
      %v745 = vand.u32 2147483647, %v705
      %v746 = vsub.f32 0.0, %v727
      %v747 = vsub.f32 0.0, %v728
      %v748 = vsub.f32 0.0, %v729
      %v749 = vsub.f32 0.0, %v730
      %v750 = vsub.f32 0.0, %v731
      %v751 = vsub.f32 0.0, %v732
      %v752 = vsub.f32 0.0, %v733
      %v753 = vsub.f32 0.0, %v734
      %v754 = vsub.f32 0.0, %v735
      %v755 = vsub.f32 0.0, %v736
      %v756 = vsub.f32 0.0, %v737
      %v757 = vsub.f32 0.0, %v738
      %v758 = vsub.f32 0.0, %v739
      %v759 = vsub.f32 0.0, %v740
      %v760 = vsub.f32 0.0, %v741
      %v761 = vsub.f32 0.0, %v742
      %v762 = vsub.f32 0.0, %v743
      %v763 = vsub.f32 0.0, %v744
      %v764 = vsub.f32 0.0, %v745
      %v765 = vmul.f32 %v746, 1.442695
      %v766 = vpow.pop %v765
      %v767 = vmul.f32 %v747, 1.442695
      %v768 = vpow.pop %v767
      %v769 = vmul.f32 %v748, 1.442695
      %v770 = vpow.pop %v769
      %v771 = vmul.f32 %v749, 1.442695
      %v772 = vpow.pop %v771
      %v773 = vmul.f32 %v750, 1.442695
      %v774 = vpow.pop %v773
      %v775 = vmul.f32 %v751, 1.442695
      %v776 = vpow.pop %v775
      %v777 = vmul.f32 %v752, 1.442695
      %v778 = vpow.pop %v777
      %v779 = vmul.f32 %v753, 1.442695
      %v780 = vpow.pop %v779
      %v781 = vmul.f32 %v754, 1.442695
      %v782 = vpow.pop %v781
      %v783 = vmul.f32 %v755, 1.442695
      %v784 = vpow.pop %v783
      %v785 = vmul.f32 %v756, 1.442695
      %v786 = vpow.pop %v785
      %v787 = vmul.f32 %v757, 1.442695
      %v788 = vpow.pop %v787
      %v789 = vmul.f32 %v758, 1.442695
      %v790 = vpow.pop %v789
      %v791 = vmul.f32 %v759, 1.442695
      %v792 = vpow.pop %v791
      %v793 = vmul.f32 %v760, 1.442695
      %v794 = vpow.pop %v793
      %v795 = vmul.f32 %v761, 1.442695
      %v796 = vpow.pop %v795
      %v797 = vmul.f32 %v762, 1.442695
      %v798 = vpow.pop %v797
      %v799 = vmul.f32 %v763, 1.442695
      %v800 = vpow.pop %v799
      %v801 = vmul.f32 %v764, 1.442695
      %v802 = vpow.pop %v801
      %v803 = vadd.f32 %v766, 1.0
      %v804 = vlog2.pop %v803
      %v805 = vmul.f32 %v804, 0.6931472
      %v806 = vmul.f32 -0.5, %v766
      %v807 = vadd.f32 %v806, 1.0
      %v808 = vmul.f32 %v807, %v766
      %v809 = vand.u32 2147483647, %v766
      %vm810 = vcmp.lt.f32.partialorder %v809, 0.0004427343
      %v811 = vsel %vm810, %v808, %v805
      %v812 = vadd.f32 %v768, 1.0
      %v813 = vlog2.pop %v812
      %v814 = vmul.f32 %v813, 0.6931472
      %v815 = vmul.f32 -0.5, %v768
      %v816 = vadd.f32 %v815, 1.0
      %v817 = vmul.f32 %v816, %v768
      %v818 = vand.u32 2147483647, %v768
      %vm819 = vcmp.lt.f32.partialorder %v818, 0.0004427343
      %v820 = vsel %vm819, %v817, %v814
      %v821 = vadd.f32 %v770, 1.0
      %v822 = vlog2.pop %v821
      %v823 = vmul.f32 %v822, 0.6931472
      %v824 = vmul.f32 -0.5, %v770
      %v825 = vadd.f32 %v824, 1.0
      %v826 = vmul.f32 %v825, %v770
      %v827 = vand.u32 2147483647, %v770
      %vm828 = vcmp.lt.f32.partialorder %v827, 0.0004427343
      %v829 = vsel %vm828, %v826, %v823
      %v830 = vadd.f32 %v772, 1.0
      %v831 = vlog2.pop %v830
      %v832 = vmul.f32 %v831, 0.6931472
      %v833 = vmul.f32 -0.5, %v772
      %v834 = vadd.f32 %v833, 1.0
      %v835 = vmul.f32 %v834, %v772
      %v836 = vand.u32 2147483647, %v772
      %vm837 = vcmp.lt.f32.partialorder %v836, 0.0004427343
      %v838 = vsel %vm837, %v835, %v832
      %v839 = vadd.f32 %v774, 1.0
      %v840 = vlog2.pop %v839
      %v841 = vmul.f32 %v840, 0.6931472
      %v842 = vmul.f32 -0.5, %v774
      %v843 = vadd.f32 %v842, 1.0
      %v844 = vmul.f32 %v843, %v774
      %v845 = vand.u32 2147483647, %v774
      %vm846 = vcmp.lt.f32.partialorder %v845, 0.0004427343
      %v847 = vsel %vm846, %v844, %v841
      %v848 = vadd.f32 %v776, 1.0
      %v849 = vlog2.pop %v848
      %v850 = vmul.f32 %v849, 0.6931472
      %v851 = vmul.f32 -0.5, %v776
      %v852 = vadd.f32 %v851, 1.0
      %v853 = vmul.f32 %v852, %v776
      %v854 = vand.u32 2147483647, %v776
      %vm855 = vcmp.lt.f32.partialorder %v854, 0.0004427343
      %v856 = vsel %vm855, %v853, %v850
      %v857 = vadd.f32 %v778, 1.0
      %v858 = vlog2.pop %v857
      %v859 = vmul.f32 %v858, 0.6931472
      %v860 = vmul.f32 -0.5, %v778
      %v861 = vadd.f32 %v860, 1.0
      %v862 = vmul.f32 %v861, %v778
      %v863 = vand.u32 2147483647, %v778
      %vm864 = vcmp.lt.f32.partialorder %v863, 0.0004427343
      %v865 = vsel %vm864, %v862, %v859
      %v866 = vadd.f32 %v780, 1.0
      %v867 = vlog2.pop %v866
      %v868 = vmul.f32 %v867, 0.6931472
      %v869 = vmul.f32 -0.5, %v780
      %v870 = vadd.f32 %v869, 1.0
      %v871 = vmul.f32 %v870, %v780
      %v872 = vand.u32 2147483647, %v780
      %vm873 = vcmp.lt.f32.partialorder %v872, 0.0004427343
      %v874 = vsel %vm873, %v871, %v868
      %v875 = vadd.f32 %v782, 1.0
      %v876 = vlog2.pop %v875
      %v877 = vmul.f32 %v876, 0.6931472
      %v878 = vmul.f32 -0.5, %v782
      %v879 = vadd.f32 %v878, 1.0
      %v880 = vmul.f32 %v879, %v782
      %v881 = vand.u32 2147483647, %v782
      %vm882 = vcmp.lt.f32.partialorder %v881, 0.0004427343
      %v883 = vsel %vm882, %v880, %v877
      %v884 = vadd.f32 %v784, 1.0
      %v885 = vlog2.pop %v884
      %v886 = vmul.f32 %v885, 0.6931472
      %v887 = vmul.f32 -0.5, %v784
      %v888 = vadd.f32 %v887, 1.0
      %v889 = vmul.f32 %v888, %v784
      %v890 = vand.u32 2147483647, %v784
      %vm891 = vcmp.lt.f32.partialorder %v890, 0.0004427343
      %v892 = vsel %vm891, %v889, %v886
      %v893 = vadd.f32 %v786, 1.0
      %v894 = vlog2.pop %v893
      %v895 = vmul.f32 %v894, 0.6931472
      %v896 = vmul.f32 -0.5, %v786
      %v897 = vadd.f32 %v896, 1.0
      %v898 = vmul.f32 %v897, %v786
      %v899 = vand.u32 2147483647, %v786
      %vm900 = vcmp.lt.f32.partialorder %v899, 0.0004427343
      %v901 = vsel %vm900, %v898, %v895
      %v902 = vadd.f32 %v788, 1.0
      %v903 = vlog2.pop %v902
      %v904 = vmul.f32 %v903, 0.6931472
      %v905 = vmul.f32 -0.5, %v788
      %v906 = vadd.f32 %v905, 1.0
      %v907 = vmul.f32 %v906, %v788
      %v908 = vand.u32 2147483647, %v788
      %vm909 = vcmp.lt.f32.partialorder %v908, 0.0004427343
      %v910 = vsel %vm909, %v907, %v904
      %v911 = vadd.f32 %v790, 1.0
      %v912 = vlog2.pop %v911
      %v913 = vmul.f32 %v912, 0.6931472
      %v914 = vmul.f32 -0.5, %v790
      %v915 = vadd.f32 %v914, 1.0
      %v916 = vmul.f32 %v915, %v790
      %v917 = vand.u32 2147483647, %v790
      %vm918 = vcmp.lt.f32.partialorder %v917, 0.0004427343
      %v919 = vsel %vm918, %v916, %v913
      %v920 = vadd.f32 %v792, 1.0
      %v921 = vlog2.pop %v920
      %v922 = vmul.f32 %v921, 0.6931472
      %v923 = vmul.f32 -0.5, %v792
      %v924 = vadd.f32 %v923, 1.0
      %v925 = vmul.f32 %v924, %v792
      %v926 = vand.u32 2147483647, %v792
      %vm927 = vcmp.lt.f32.partialorder %v926, 0.0004427343
      %v928 = vsel %vm927, %v925, %v922
      %v929 = vadd.f32 %v794, 1.0
      %v930 = vlog2.pop %v929
      %v931 = vmul.f32 %v930, 0.6931472
      %v932 = vmul.f32 -0.5, %v794
      %v933 = vadd.f32 %v932, 1.0
      %v934 = vmul.f32 %v933, %v794
      %v935 = vand.u32 2147483647, %v794
      %vm936 = vcmp.lt.f32.partialorder %v935, 0.0004427343
      %v937 = vsel %vm936, %v934, %v931
      %v938 = vadd.f32 %v796, 1.0
      %v939 = vlog2.pop %v938
      %v940 = vmul.f32 %v939, 0.6931472
      %v941 = vmul.f32 -0.5, %v796
      %v942 = vadd.f32 %v941, 1.0
      %v943 = vmul.f32 %v942, %v796
      %v944 = vand.u32 2147483647, %v796
      %vm945 = vcmp.lt.f32.partialorder %v944, 0.0004427343
      %v946 = vsel %vm945, %v943, %v940
      %v947 = vadd.f32 %v798, 1.0
      %v948 = vlog2.pop %v947
      %v949 = vmul.f32 %v948, 0.6931472
      %v950 = vmul.f32 -0.5, %v798
      %v951 = vadd.f32 %v950, 1.0
      %v952 = vmul.f32 %v951, %v798
      %v953 = vand.u32 2147483647, %v798
      %vm954 = vcmp.lt.f32.partialorder %v953, 0.0004427343
      %v955 = vsel %vm954, %v952, %v949
      %v956 = vadd.f32 %v800, 1.0
      %v957 = vlog2.pop %v956
      %v958 = vmul.f32 %v957, 0.6931472
      %v959 = vmul.f32 -0.5, %v800
      %v960 = vadd.f32 %v959, 1.0
      %v961 = vmul.f32 %v960, %v800
      %v962 = vand.u32 2147483647, %v800
      %vm963 = vcmp.lt.f32.partialorder %v962, 0.0004427343
      %v964 = vsel %vm963, %v961, %v958
      %v965 = vadd.f32 %v802, 1.0
      %v966 = vlog2.pop %v965
      %v967 = vmul.f32 %v966, 0.6931472
      %v968 = vmul.f32 -0.5, %v802
      %v969 = vadd.f32 %v968, 1.0
      %v970 = vmul.f32 %v969, %v802
      %v971 = vand.u32 2147483647, %v802
      %vm972 = vcmp.lt.f32.partialorder %v971, 0.0004427343
      %v973 = vsel %vm972, %v970, %v967
      %v974 = vadd.f32 %v708, %v811
      %v975 = vadd.f32 %v709, %v820
      %v976 = vadd.f32 %v710, %v829
      %v977 = vadd.f32 %v711, %v838
      %v978 = vadd.f32 %v712, %v847
      %v979 = vadd.f32 %v713, %v856
      %v980 = vadd.f32 %v714, %v865
      %v981 = vadd.f32 %v715, %v874
      %v982 = vadd.f32 %v716, %v883
      %v983 = vadd.f32 %v717, %v892
      %v984 = vadd.f32 %v718, %v901
      %v985 = vadd.f32 %v719, %v910
      %v986 = vadd.f32 %v720, %v919
      %v987 = vadd.f32 %v721, %v928
      %v988 = vadd.f32 %v722, %v937
      %v989 = vadd.f32 %v723, %v946
      %v990 = vadd.f32 %v724, %v955
      %v991 = vadd.f32 %v725, %v964
      %v992 = vadd.f32 %v726, %v973
      %v993 = vadd.f32 %v974, 1e-06
      %v994 = vadd.f32 %v975, 1e-06
      %v995 = vadd.f32 %v976, 1e-06
      %v996 = vadd.f32 %v977, 1e-06
      %v997 = vadd.f32 %v978, 1e-06
      %v998 = vadd.f32 %v979, 1e-06
      %v999 = vadd.f32 %v980, 1e-06
      %v1000 = vadd.f32 %v981, 1e-06
      %v1001 = vadd.f32 %v982, 1e-06
      %v1002 = vadd.f32 %v983, 1e-06
      %v1003 = vadd.f32 %v984, 1e-06
      %v1004 = vadd.f32 %v985, 1e-06
      %v1005 = vadd.f32 %v986, 1e-06
      %v1006 = vadd.f32 %v987, 1e-06
      %v1007 = vadd.f32 %v988, 1e-06
      %v1008 = vadd.f32 %v989, 1e-06
      %v1009 = vadd.f32 %v990, 1e-06
      %v1010 = vadd.f32 %v991, 1e-06
      %v1011 = vadd.f32 %v992, 1e-06
      %1012 = vst.msk [vmem:[%s267] sm:$0xff] %vm517, %v993
      %1013 = vst.msk [vmem:[%s267 + $0x8] sm:$0xff] %vm517, %v994
      %1014 = vst.msk [vmem:[%s267 + $0x10] sm:$0xff] %vm517, %v995
      %1015 = vst.msk [vmem:[%s267 + $0x18] sm:$0xff] %vm517, %v996
      %1016 = vst.msk [vmem:[%s267 + $0x20] sm:$0xff] %vm517, %v997
      %1017 = vst.msk [vmem:[%s267 + $0x28] sm:$0xff] %vm517, %v998
      %1018 = vst.msk [vmem:[%s267 + $0x30] sm:$0xff] %vm517, %v999
      %1019 = vst.msk [vmem:[%s267 + $0x38] sm:$0xff] %vm517, %v1000
      %1020 = vst.msk [vmem:[%s267 + $0x40] sm:$0xff] %vm517, %v1001
      %1021 = vst.msk [vmem:[%s267 + $0x48] sm:$0xff] %vm517, %v1002
      %1022 = vst.msk [vmem:[%s267 + $0x50] sm:$0xff] %vm517, %v1003
      %1023 = vst.msk [vmem:[%s267 + $0x58] sm:$0xff] %vm517, %v1004
      %1024 = vst.msk [vmem:[%s267 + $0x60] sm:$0xff] %vm517, %v1005
      %1025 = vst.msk [vmem:[%s267 + $0x68] sm:$0xff] %vm517, %v1006
      %1026 = vst.msk [vmem:[%s267 + $0x70] sm:$0xff] %vm517, %v1007
      %1027 = vst.msk [vmem:[%s267 + $0x78] sm:$0xff] %vm517, %v1008
      %1028 = vst.msk [vmem:[%s267 + $0x80] sm:$0xff] %vm517, %v1009
      %1029 = vst.msk [vmem:[%s267 + $0x88] sm:$0xff] %vm517, %v1010
      %1030 = vst.msk [vmem:[%s267 + $0x90] sm:$0xff] %vm517, %v1011
      %s1031 = smul.u32 19, %s18
      %p1032 = scmp.lt.s32.totalorder %s1031, 37
      %s1033 = scalar_select %p1032, %s1031, 37
      %s1034 = smul.addr %s1033, 8
      %s1035 = scalar_lea.vmem %s5, %s1034
      %s1036 = smul.u32 19, %s18
      %p1037 = scmp.lt.s32.totalorder %s1036, 37
      %s1038 = scalar_select %p1037, %s1036, 37
      %s1039 = smul.addr %s1038, 8
      %s1040 = scalar_lea.vmem %s6, %s1039
      // Predicated region
      $region41: #{tpu_custom_call.1} parent=39 // pred_check
        %p1041 = pneg %p146
      $region42: #{tpu_custom_call.1} parent=39 // pred_check_branch
        %1043 = sbr.rel (%p1041) target = $region44
      $region43: #{tpu_custom_call.1} parent=39 // pred_region
        %s1044 = smul.u32 19, %s18
      $region44: #{tpu_custom_call.1} parent=39 // pred_fallthru
        _
      // Predicated region
      $region45: #{tpu_custom_call.1} parent=39 // pred_check
        %p1045 = pneg %p172
      $region46: #{tpu_custom_call.1} parent=39 // pred_check_branch
        %1047 = sbr.rel (%p1045) target = $region48
      $region47: #{tpu_custom_call.1} parent=39 // pred_region
        %s1048 = smul.u32 19, %s18
      $region48: #{tpu_custom_call.1} parent=39 // pred_fallthru
        _
    $region40: #{tpu_custom_call.1} parent=5 // pred_fallthru
      _
    %p1049 = scmp.le.s32.totalorder 2, %s13
    // Predicated region
    $region49: #{tpu_custom_call.1} parent=5 // pred_check
      %p1050 = pneg %p1049
    $region50: #{tpu_custom_call.1} parent=5 // pred_check_branch
      %1052 = sbr.rel (%p1050) target = $region52
    $region51: #{tpu_custom_call.1} parent=5 // pred_region
      %s1053 = ssub.s32 %s13, 2
      // Predicated region
      $region53: #{tpu_custom_call.1} parent=51 // pred_check
        %p1054 = pneg %p152
      $region54: #{tpu_custom_call.1} parent=51 // pred_check_branch
        %1056 = sbr.rel (%p1054) target = $region56
      $region55: #{tpu_custom_call.1} parent=51 // pred_region
        %s1057 = smul.u32 19, %s19
        %p1058 = scmp.lt.s32.totalorder %s1057, 37
        %s1059 = scalar_select %p1058, %s1057, 37
        %s1060 = smul.addr %s1059, 8
        %s1061 = scalar_lea.vmem %s5, %s1060
      $region56: #{tpu_custom_call.1} parent=51 // pred_fallthru
        _
      // Predicated region
      $region57: #{tpu_custom_call.1} parent=51 // pred_check
        %p1062 = pneg %p178
      $region58: #{tpu_custom_call.1} parent=51 // pred_check_branch
        %1064 = sbr.rel (%p1062) target = $region60
      $region59: #{tpu_custom_call.1} parent=51 // pred_region
        %s1065 = smul.u32 19, %s19
        %p1066 = scmp.lt.s32.totalorder %s1065, 37
        %s1067 = scalar_select %p1066, %s1065, 37
        %s1068 = smul.addr %s1067, 8
        %s1069 = scalar_lea.vmem %s6, %s1068
      $region60: #{tpu_custom_call.1} parent=51 // pred_fallthru
        _
    $region52: #{tpu_custom_call.1} parent=5 // pred_fallthru
      _
  $region6: #{tpu_custom_call.1} parent=0 // loop_footer
    %s17 = sadd.s32 1, %s13
  $region7: #{tpu_custom_call.1} parent=0 // loop_footer_branch
    %12 = sbr.rel target = $region3
  $region8: #{tpu_custom_call.1} parent=0 // loop_exit
    _

</llo_original>
